<compile_context>
chip_gen: v6e
topology: v6e:2x2x1
jax: 0.10.0
libtpu: 0.0.40
codegen_flags: <defaults>
</compile_context>

<pallas_src>
from collections import OrderedDict
import functools

import numpy as np
import jax
import jax.numpy as jnp
from jax.experimental import pallas as pl
from jax.experimental.pallas import tpu as pltpu


LANE = 128          # lane width: channel dims padded to multiples of this
SUBLANE_BF16 = 16   # bf16 sublane pack: padded image width rounded to this


def _round_up(x, m):
    return ((x + m - 1) // m) * m


def _is_v5e():
    try:
        kind = jax.devices()[0].device_kind.lower()
    except Exception:
        return False
    return ("v5 lite" in kind) or ("v5e" in kind) or ("v5lite" in kind)


def _vmem_capacity_bytes():
    try:
        return int(pltpu.get_tpu_info().vmem_capacity_bytes)
    except Exception:
        return 64 * 1024 * 1024   # conservative per-TC default (v7x)


@functools.lru_cache(maxsize=None)
def _roll_is_jnp_convention():
    """Probe pltpu.roll once: True if it matches jnp.roll (element j -> j+shift)."""
    def k(x_ref, o_ref):
        o_ref[...] = pltpu.roll(x_ref[...], 1, axis=0)
    x = jnp.broadcast_to(jnp.arange(8, dtype=jnp.float32)[:, None], (8, 128))
    y = pl.pallas_call(
        k, out_shape=jax.ShapeDtypeStruct((8, 128), jnp.float32))(x)
    return bool(np.asarray(y)[1, 0] == 0.0)


# ---------------------------------------------------------------------------
# Pallas kernel: 3x3 conv (stride 1) + bias + ReLU for one
# (batch element, Cout tile, H band).  Operands are GEMM-shaped:
# flattened spatial rows x lane-dense channels.
# ---------------------------------------------------------------------------
def _conv3x3_bias_relu_kernel(x_ref, w_ref, b_ref, m_ref, o_ref, acc_ref, *,
                              band, wpp, roll_fwd):
    # x_ref:   (1, (H+2)*Wpp, Cin_p) bf16  whole padded image, spatial-flattened
    # w_ref:   (9, Cin_p, TCO)       bf16  taps (kh*3+kw) for this Cout tile
    # b_ref:   (1, TCO)              f32
    # m_ref:   (band*Wpp, 1)         f32   1.0 interior cols, 0.0 halo/pad cols
    # o_ref:   (1, band*Wpp, TCO)    bf16  W-halo-padded output band (lane-dense)
    # acc_ref: (band*Wpp, TCO)       f32   VMEM accumulator (bounds vreg pressure)
    rows, tco = acc_ref.shape
    h = pl.program_id(2)

    # Initialize the accumulator with the broadcast bias (saves a final pass).
    acc_ref[...] = jnp.broadcast_to(b_ref[...], (rows, tco))

    for kh in range(3):
        # Contiguous, sublane-aligned row-window load (start is a multiple of
        # Wpp, itself a multiple of 16): no operand relayouts for any tap.
        start = pl.multiple_of((h * band + kh) * wpp, wpp)
        win = x_ref[0, pl.ds(start, rows), :]            # (rows, Cin_p) bf16
        for kw in range(3):
            r = jnp.dot(win, w_ref[kh * 3 + kw],
                        preferred_element_type=jnp.float32)
            # Align tap kw with the left-halo-shifted output layout by rotating
            # the matmul *result* on the (idle) XLU; wrapped rows only ever land
            # in masked halo columns.
            s = (1 - kw) % rows if roll_fwd else (kw - 1) % rows
            if s:
                r = pltpu.roll(r, s, axis=0)
            acc_ref[...] += r

    out = jnp.maximum(acc_ref[...], 0.0) * m_ref[...]    # ReLU + zero halo cols
    o_ref[0] = out.astype(o_ref.dtype)


def conv3x3_bias_relu(x_flat, w9, b, colmask, *, H, W, wpp, cout_p, co_tile,
                      band, vmem_limit):
    """x_flat: (N, (H+2)*Wpp, Cin_p) bf16 (halo + alignment columns zeroed);
    w9: (9, Cin_p, Cout_p) bf16; b: (1, Cout_p) f32; colmask: (band*Wpp, 1) f32.
    Returns (N, H*Wpp, Cout_p) bf16 with the W halo already baked in."""
    N, hp_wpp, cin_p = x_flat.shape
    rows = band * wpp

    # Put the bigger operand on the outer grid axis so it is not re-DMA'd.
    weight_major = (9 * cin_p * cout_p) > (hp_wpp * cin_p)
    if weight_major:
        grid = (cout_p // co_tile, N, H // band)
        x_map = lambda co, n, h: (n, 0, 0)
        w_map = lambda co, n, h: (0, 0, co)
        b_map = lambda co, n, h: (0, co)
        m_map = lambda co, n, h: (0, 0)
        o_map = lambda co, n, h: (n, h, co)
    else:
        grid = (N, cout_p // co_tile, H // band)
        x_map = lambda n, co, h: (n, 0, 0)
        w_map = lambda n, co, h: (0, 0, co)
        b_map = lambda n, co, h: (0, co)
        m_map = lambda n, co, h: (0, 0)
        o_map = lambda n, co, h: (n, h, co)

    kernel = functools.partial(_conv3x3_bias_relu_kernel, band=band, wpp=wpp,
                               roll_fwd=_roll_is_jnp_convention())
    return pl.pallas_call(
        kernel,
        out_shape=jax.ShapeDtypeStruct((N, H * wpp, cout_p), jnp.bfloat16),
        grid=grid,
        in_specs=[
            pl.BlockSpec((1, hp_wpp, cin_p), x_map),
            pl.BlockSpec((9, cin_p, co_tile), w_map),
            pl.BlockSpec((1, co_tile), b_map),
            pl.BlockSpec((rows, 1), m_map),
        ],
        out_specs=pl.BlockSpec((1, rows, co_tile), o_map),
        scratch_shapes=[pltpu.VMEM((rows, co_tile), jnp.float32)],
        compiler_params=pltpu.CompilerParams(
            dimension_semantics=("parallel", "parallel", "arbitrary"),
            vmem_limit_bytes=vmem_limit),
    )(x_flat, w9, b, colmask)


# ---------------------------------------------------------------------------
# GetFeatureMap equivalent: run children sequentially, collect at return idxs,
# break early once all requested maps are collected (peek/dequeue semantics of
# the original module, including the skip-if-unsorted behaviour).
# ---------------------------------------------------------------------------
class GetFeatureMapPallas:
    def __init__(self, layers, return_layers):
        # layers: list of (w_hwio f32 (3,3,cin,cout), bias f32 (cout,))
        self.return_layers = dict(return_layers)
        self.packed = []
        is_v5e = _is_v5e()
        for (w, b) in layers:
            cin, cout = int(w.shape[2]), int(w.shape[3])
            cin_p, cout_p = _round_up(cin, LANE), _round_up(cout, LANE)
            w_p = jnp.zeros((3, 3, cin_p, cout_p), jnp.float32)
            w_p = w_p.at[:, :, :cin, :cout].set(w)
            w9 = w_p.reshape(9, cin_p, cout_p).astype(jnp.bfloat16)
            b_p = jnp.zeros((1, cout_p), jnp.float32).at[0, :cout].set(b)
            # v5e MXU is 4x128^2 -> 128-wide output tiles already fill it;
            # 256-wide tiles only help the 2x256^2 MXUs of v6e/v7x.
            co_tile = 256 if (cout_p % 256 == 0 and not is_v5e) else 128
            self.packed.append((w9, b_p, cin, cout, cin_p, cout_p, co_tile))

    def __call__(self, x_nchw):
        res = OrderedDict()
        keys = list(self.return_layers.keys())
        vals = list(self.return_layers.values())

        N, C, H, W = x_nchw.shape
        wpp = _round_up(W + 2, SUBLANE_BF16)   # sublane-aligned padded width

        # One NCHW -> NHWC conversion; bake the W halo (+ alignment pad) and the
        # channel pad once, then flatten spatial dims so the kernel works on
        # lane-dense (rows, C) GEMM operands end to end.
        first_cin_p = self.packed[0][4]
        x = jnp.transpose(x_nchw, (0, 2, 3, 1)).astype(jnp.bfloat16)
        x = jnp.pad(x, ((0, 0), (1, 1), (1, wpp - 1 - W),
                        (0, first_cin_p - C)))
        x = x.reshape(N, (H + 2) * wpp, first_cin_p)

        vmem_cap = _vmem_capacity_bytes()

        for idx, (w9, b_p, cin, cout, cin_p, cout_p, co_tile) in enumerate(self.packed):
            # H-band size: keep the f32 accumulator / per-tap matmul result small
            # enough to stay out of vreg-spill territory (<= 64 KiB).
            band = 1
            for cand in range(1, H + 1):
                if H % cand == 0 and cand * wpp * co_tile * 4 <= 64 * 1024:
                    band = cand
            rows = band * wpp

            # Column mask: keep interior cols 1..W, zero halo/alignment cols so
            # the stored activation is already W-halo-padded for the next layer.
            col = np.arange(wpp)
            row_mask = ((col >= 1) & (col <= W)).astype(np.float32)
            colmask = jnp.asarray(np.tile(row_mask, band)[:, None])

            # Per-chip VMEM limit from the actual (double-buffered) footprint.
            foot = (2 * x.shape[1] * cin_p * 2       # x block (bf16)
                    + 2 * 9 * cin_p * co_tile * 2    # weights block
                    + 2 * rows * co_tile * 2         # output block
                    + rows * co_tile * 4             # f32 accumulator scratch
                    + 2 * rows * 128 * 4             # column mask (lane-padded)
                    + 2 * 8 * 128 * 4)               # bias row
            vmem_limit = int(min(max(2 * foot + (2 << 20), 16 << 20),
                                 int(0.75 * vmem_cap)))

            y = conv3x3_bias_relu(x, w9, b_p, colmask, H=H, W=W, wpp=wpp,
                                  cout_p=cout_p, co_tile=co_tile, band=band,
                                  vmem_limit=vmem_limit)   # (N, H*wpp, cout_p)

            if keys and idx == keys[0]:
                keys.pop(0)
                fm = y.reshape(N, H, wpp, cout_p)[:, :, 1:1 + W, :cout]
                res[vals.pop(0)] = jnp.transpose(fm.astype(jnp.float32),
                                                 (0, 3, 1, 2))      # NCHW f32
            if not keys:
                break

            # Next layer's input: W halo already produced by the kernel; only the
            # 1-row top/bottom H halo is added here.
            # TODO(synk): fold the H halo into the kernel's output (or fuse
            # adjacent layers keeping the activation in VMEM) to remove this last
            # per-layer XLA pad round trip.
            y4 = y.reshape(N, H, wpp, cout_p)
            y4 = jnp.pad(y4, ((0, 0), (1, 1), (0, 0), (0, 0)))
            x = y4.reshape(N, (H + 2) * wpp, cout_p)

        return res


# ---------------------------------------------------------------------------
# Deterministic synthetic backbone parameters.
# ---------------------------------------------------------------------------
def make_backbone_params(channel_plan, key):
    """channel_plan: [(cin, cout), ...] for each Conv3x3+ReLU child."""
    layers = []
    for i, (cin, cout) in enumerate(channel_plan):
        kw_ = jax.random.fold_in(key, 2 * i)
        kb_ = jax.random.fold_in(key, 2 * i + 1)
        fan_in = 9 * cin
        w = jax.random.normal(kw_, (3, 3, cin, cout), jnp.float32) / np.sqrt(fan_in)
        b = 0.01 * jax.random.normal(kb_, (cout,), jnp.float32)
        layers.append((w, b))
    return layers


def _reference_forward(x_nchw, layers, return_layers):
    """Pure-JAX reference with matching numerics (bf16 operands, f32 accum)."""
    res = OrderedDict()
    keys = list(return_layers.keys())
    vals = list(return_layers.values())
    x = x_nchw.astype(jnp.bfloat16)
    for idx, (w, b) in enumerate(layers):
        y = jax.lax.conv_general_dilated(
            x, w.astype(jnp.bfloat16), window_strides=(1, 1), padding="SAME",
            dimension_numbers=("NCHW", "HWIO", "NCHW"),
            preferred_element_type=jnp.float32)
        y = jnp.maximum(y + b.reshape(1, -1, 1, 1), 0.0)
        x = y.astype(jnp.bfloat16)
        if keys and idx == keys[0]:
            keys.pop(0)
            res[vals.pop(0)] = x.astype(jnp.float32)
        if not keys:
            break
    return res


if __name__ == "__main__":
    key = jax.random.PRNGKey(0)

    # Input consistent with the module's conv-backbone usage: NCHW.
    N, C, H, W = 2, 4, 16, 16
    x = jax.random.normal(jax.random.fold_in(key, 100), (N, C, H, W), jnp.float32)

    # Synthetic `.features`: four Conv3x3+ReLU children.
    channel_plan = [(4, 8), (8, 8), (8, 16), (16, 16)]
    layers = make_backbone_params(channel_plan, key)

    # Collect feature maps after children 1 and 3 (early-break semantics).
    return_layers = {1: 1, 3: 3}

    backbone = GetFeatureMapPallas(layers, return_layers)
    out = backbone(x)
    out = jax.tree_util.tree_map(jax.block_until_ready, out)

    # sanity check against a pure-JAX reference (same bf16/f32 numerics)
    ref = _reference_forward(x, layers, return_layers)
    assert list(out.keys()) == list(ref.keys())
    for k in out:
        assert out[k].shape == ref[k].shape, (out[k].shape, ref[k].shape)
        np.testing.assert_allclose(np.asarray(out[k]), np.asarray(ref[k]),
                                   rtol=2e-2, atol=2e-2)

    print("KERNEL_OK")
</pallas_src>

<mosaic_0001>
module attributes {stable_mosaic.version = 11 : i64} {
  func.func @k(%arg0: memref<8x128xf32, #tpu.memory_space<vmem>>, %arg1: memref<8x128xf32, #tpu.memory_space<vmem>>) attributes {dimension_semantics = [], scalar_prefetch = 0 : i64, scratch_operands = 0 : i64, tpu.core_type = #tpu.core_type<tc>} {
    %c0 = arith.constant 0 : index
    %c0_0 = arith.constant 0 : index
    %0 = vector.load %arg0[%c0, %c0_0] : memref<8x128xf32, #tpu.memory_space<vmem>>, vector<8x128xf32>
    %c1_i32 = arith.constant 1 : i32
    %1 = tpu.dynamic_rotate %0 by %c1_i32 dim 0 : vector<8x128xf32>, i32 -> vector<8x128xf32>
    %c0_1 = arith.constant 0 : index
    %c0_2 = arith.constant 0 : index
    %2 = vector.load %arg1[%c0_1, %c0_2] : memref<8x128xf32, #tpu.memory_space<vmem>>, vector<8x128xf32>
    tpu.vector_store %arg1[%c0_1, %c0_2], %1 {strides = array<i32>} : memref<8x128xf32, #tpu.memory_space<vmem>>, vector<8x128xf32>,
    return
  }
}

</mosaic_0001>

<llo_original>
// kernel: tpu_custom_call.1
$region0: #{tpu_custom_call.1}
  #allocation0 [shape = 'u32[]', space=smem, size = 0x4, offset = 0x4, fixed_abs, tag = 'smem constant byte address 0x4 - core index']
  #allocation1 [shape = 'u32[144,128]{1,0:T(1,128)}', space=vmem, size = 0x12000, scoped, tag = 'internal scratch']
  %s0 = inlined_call_operand.hbm [shape: f32[8,128], index: 0, kind: input, shape index: {}]
  %s1 = inlined_call_operand.hbm [shape: f32[8,128], index: 1, kind: output, shape index: {}]
  %s2 = sld [smem:[#allocation0]]
  $region18: #{tpu_custom_call.1} parent=0
    _
  %s4 = ssub.s32 1, %s2
  %s5 = scalar_select 0, %s4, %s2
  $region1: #{tpu_custom_call.1} parent=0
    #allocation2 [shape = 'u8[4096]{0}', space=vmem, size = 0x1000, scoped, tag = 'input window, operand 0, single buffered']
    #allocation3 [shape = 's32[1]{0}', space=sflag, size = 0x4, scoped, tag = 'scoped memory for tpu_custom_call.1']
    #allocation4 [shape = 's32[1]{0}', space=sflag, size = 0x4, scoped, tag = 'scoped memory for tpu_custom_call.1']
    #allocation5 [shape = 'u8[4096]{0}', space=vmem, size = 0x1000, scoped, tag = 'output window, operand 0, single buffered']
    %6 = vsyncpa [#allocation3], 0
    %7 = vsyncpa [#allocation4], 0
    // Predicated region
    $region2: #{tpu_custom_call.1} parent=1 // pred_check
      _
    $region3: #{tpu_custom_call.1} parent=1 // pred_check_branch
      %9 = sbr.rel (0) target = $region5
    $region4: #{tpu_custom_call.1} parent=1 // pred_region
      %s11 = ssub.s32 128, 128
      %12 = vsyncadd [#allocation3], %s11
      %s14 = sshll.u32 [#allocation2], 4
      %s15 = int_to_ptr.vmem [resolvable:$true] %s14
      %17 = dma.hbm_to_vmem [thread:$0]  %s0, 128, %s15, [#allocation3]
    $region5: #{tpu_custom_call.1} parent=1 // pred_fallthru
      _
    // Predicated region
    $region6: #{tpu_custom_call.1} parent=1 // pred_check
      _
    $region7: #{tpu_custom_call.1} parent=1 // pred_check_branch
      %19 = sbr.rel (0) target = $region9
    $region8: #{tpu_custom_call.1} parent=1 // pred_region
      %20 = dma.done [#allocation3], 128
    $region9: #{tpu_custom_call.1} parent=1 // pred_fallthru
      _
    %v21 = vld [vmem:[#allocation2] sm:$0xff]
    %v22 = vrot.slane %v21, 7
    %23 = vst [vmem:[#allocation5] sm:$0xff] %v22
    // Predicated region
    $region10: #{tpu_custom_call.1} parent=1 // pred_check
      _
    $region11: #{tpu_custom_call.1} parent=1 // pred_check_branch
      %25 = sbr.rel (0) target = $region13
    $region12: #{tpu_custom_call.1} parent=1 // pred_region
      %s27 = ssub.s32 128, 128
      %28 = vsyncadd [#allocation4], %s27
      %s30 = sshll.u32 [#allocation5], 4
      %s31 = int_to_ptr.vmem [resolvable:$true] %s30
      %33 = dma.vmem_to_hbm [thread:$0]  %s31, 128, %s1, [#allocation4]
    $region13: #{tpu_custom_call.1} parent=1 // pred_fallthru
      _
    // Predicated region
    $region14: #{tpu_custom_call.1} parent=1 // pred_check
      _
    $region15: #{tpu_custom_call.1} parent=1 // pred_check_branch
      %35 = sbr.rel (0) target = $region17
    $region16: #{tpu_custom_call.1} parent=1 // pred_region
      %36 = dma.done [#allocation4], 128
    $region17: #{tpu_custom_call.1} parent=1 // pred_fallthru
      _
    %37 = vsyncpa [#allocation3], 1
    %38 = vsyncpa [#allocation4], 1

</llo_original>
